<compile_context>
chip_gen: v7x
topology: tpu7x:2x2x1
jax: 0.10.0
libtpu: 0.0.40
codegen_flags: <defaults>
</compile_context>

<pallas_src>
import functools

import jax
import jax.numpy as jnp
from jax import lax
from jax.experimental import pallas as pl
from jax.experimental.pallas import tpu as pltpu


def _round_up(x, m):
    return ((x + m - 1) // m) * m


def _double_conv_kernel(x_ref, w1_ref, b1_ref, w2_ref, b2_ref, o_ref,
                        slab1_ref, mid_ref, slab2_ref,
                        *, W, M, Cin_p, Cout_p, Cout, MFRONT):
    # x_ref   : (1, Cin_p, (W+1) + M + (W+1)) bf16  flat-padded NCHW input
    # w1_ref  : (Cout_p, 9*Cin_p)  bf16  BN1 scale folded in, K order (dy,dx,ci)
    # w2_ref  : (Cout_p, 9*Cout_p) bf16  BN2 scale folded in
    # b*_ref  : (Cout_p, 1)        f32   folded BN bias
    # o_ref   : (1, Cout, M)       f32   flattened spatial on the lane axis
    # slab*   : (9*C, M) bf16 im2col scratch; mid: conv1 activation + halos
    f32 = jnp.float32

    # Column masks killing left/right wrap-around of the flat shift
    # (top/bottom conv padding is real zeros in the flat halo).
    col = lax.broadcasted_iota(jnp.int32, (1, M), 1) % W
    not_left = col != 0          # tap dx=0 reads px-1: invalid at px == 0
    not_right = col != (W - 1)   # tap dx=2 reads px+1: invalid at px == W-1

    def build_slab(src_ref, slab_ref, c, start0):
        # 9 shifted (c, M) copies -> one (9c, M) slab -> single K=9c matmul.
        for dy in range(3):
            for dx in range(3):
                blk = src_ref[:, pl.ds(start0 + dy * W + dx, M)]
                if dx == 0:
                    blk = jnp.where(not_left, blk, jnp.zeros_like(blk))
                elif dx == 2:
                    blk = jnp.where(not_right, blk, jnp.zeros_like(blk))
                k = dy * 3 + dx
                slab_ref[k * c:(k + 1) * c, :] = blk

    # ---- conv1 + BN1 + ReLU: one K = 9*Cin_p bf16 matmul ----
    build_slab(x_ref.at[0], slab1_ref, Cin_p, 0)
    acc1 = jnp.dot(w1_ref[...], slab1_ref[...], preferred_element_type=f32)
    y1 = jnp.maximum(acc1 + b1_ref[...], 0.0).astype(jnp.bfloat16)

    # Park y1 in VMEM; zero only the small halo strips (not the whole buffer).
    mid_ref[:, :MFRONT] = jnp.zeros((Cout_p, MFRONT), jnp.bfloat16)
    mid_ref[:, MFRONT + M:] = jnp.zeros(
        (Cout_p, mid_ref.shape[1] - MFRONT - M), jnp.bfloat16)
    mid_ref[:, MFRONT:MFRONT + M] = y1

    # ---- conv2 + BN2 + ReLU: one K = 9*Cout_p bf16 matmul ----
    build_slab(mid_ref, slab2_ref, Cout_p, MFRONT - W - 1)
    acc2 = jnp.dot(w2_ref[...], slab2_ref[...], preferred_element_type=f32)
    y2 = jnp.maximum(acc2 + b2_ref[...], 0.0)

    # Dropout(p=0.4): identity in eval mode.
    # TODO(synk): training-mode dropout (pltpu.prng_random_bits) and batch-stat
    # BatchNorm are not emitted.
    o_ref[0, :, :] = y2[:Cout, :].astype(o_ref.dtype)


def double_conv(x_nchw, w1, g1, be1, rm1, rv1, w2, g2, be2, rm2, rv2,
                eps=1e-5):
    """DoubleConv forward. x_nchw: (B, Cin, H, W); w*: (Cout, Cin, 3, 3)."""
    B, Cin, H, W = x_nchw.shape
    Cout = w1.shape[0]
    M = H * W

    Cin_p = _round_up(Cin, 8)
    Cout_p = _round_up(Cout, 8)

    PF = W + 1                       # flat halo covering top/bottom conv pad
    L = PF + M + PF
    MFRONT = _round_up(W + 1, 128)   # lane-aligned halo in the mid scratch
    MIDLEN = MFRONT + M + (W + 1)

    # Input: NCHW -> (B, Cin_p, L) flat bf16. One cheap pad, no transpose, no
    # 2-D spatial pad.
    xf = x_nchw.reshape(B, Cin, M)
    xp = jnp.pad(xf, ((0, 0), (0, Cin_p - Cin), (PF, PF))).astype(jnp.bfloat16)

    # Fold BN (eval mode) scale into conv weights; keep only bias in-kernel.
    inv1 = g1 / jnp.sqrt(rv1 + eps)
    inv2 = g2 / jnp.sqrt(rv2 + eps)
    b1 = be1 - rm1 * inv1
    b2 = be2 - rm2 * inv2

    def _flatten_w(w, scale, ci_p, co_p):
        # OIHW -> (co_p, 9*ci_p), K ordered (dy, dx, ci), BN scale folded in.
        co, ci = w.shape[0], w.shape[1]
        wf = (w * scale[:, None, None, None]).transpose(0, 2, 3, 1)  # (co,3,3,ci)
        wf = jnp.pad(wf, ((0, co_p - co), (0, 0), (0, 0), (0, ci_p - ci)))
        return wf.reshape(co_p, 9 * ci_p).astype(jnp.bfloat16)

    w1f = _flatten_w(w1, inv1, Cin_p, Cout_p)
    w2f = _flatten_w(w2, inv2, Cout_p, Cout_p)
    b1p = jnp.pad(b1, (0, Cout_p - Cout)).reshape(Cout_p, 1).astype(jnp.float32)
    b2p = jnp.pad(b2, (0, Cout_p - Cout)).reshape(Cout_p, 1).astype(jnp.float32)

    kernel = functools.partial(
        _double_conv_kernel, W=W, M=M, Cin_p=Cin_p, Cout_p=Cout_p, Cout=Cout,
        MFRONT=MFRONT)

    out_flat = pl.pallas_call(
        kernel,
        out_shape=jax.ShapeDtypeStruct((B, Cout, M), x_nchw.dtype),
        grid_spec=pltpu.PrefetchScalarGridSpec(
            num_scalar_prefetch=0,
            grid=(B,),
            in_specs=[
                pl.BlockSpec((1, Cin_p, L), lambda b: (b, 0, 0)),
                pl.BlockSpec((Cout_p, 9 * Cin_p), lambda b: (0, 0)),
                pl.BlockSpec((Cout_p, 1), lambda b: (0, 0)),
                pl.BlockSpec((Cout_p, 9 * Cout_p), lambda b: (0, 0)),
                pl.BlockSpec((Cout_p, 1), lambda b: (0, 0)),
            ],
            out_specs=pl.BlockSpec((1, Cout, M), lambda b: (b, 0, 0)),
            scratch_shapes=[
                pltpu.VMEM((9 * Cin_p, M), jnp.bfloat16),   # conv1 im2col slab
                pltpu.VMEM((Cout_p, MIDLEN), jnp.bfloat16),  # conv1 activation
                pltpu.VMEM((9 * Cout_p, M), jnp.bfloat16),  # conv2 im2col slab
            ],
        ),
        compiler_params=pltpu.CompilerParams(
            dimension_semantics=("parallel",)),
    )(xp, w1f, b1p, w2f, b2p)

    return out_flat.reshape(B, Cout, H, W)  # contiguous reshape, no transpose


def _ref_forward(x, w1, s1, b1, w2, s2, b2):
    """Pure-JAX f32 reference (NCHW / OIHW), BN folded, dropout = identity."""
    dn = ('NCHW', 'OIHW', 'NCHW')
    y = lax.conv_general_dilated(x, w1, (1, 1), 'SAME', dimension_numbers=dn)
    y = jnp.maximum(y * s1[None, :, None, None] + b1[None, :, None, None], 0.0)
    y = lax.conv_general_dilated(y, w2, (1, 1), 'SAME', dimension_numbers=dn)
    y = jnp.maximum(y * s2[None, :, None, None] + b2[None, :, None, None], 0.0)
    return y


if __name__ == "__main__":
    B, Cin, Cout, H, W = 2, 4, 8, 16, 16
    key = jax.random.PRNGKey(0)
    keys = jax.random.split(key, 12)

    x = jax.random.normal(keys[0], (B, Cin, H, W), dtype=jnp.float32)

    # Conv weights (OIHW, bias=False) and BatchNorm parameters.
    w1 = 0.1 * jax.random.normal(keys[1], (Cout, Cin, 3, 3), dtype=jnp.float32)
    g1 = 1.0 + 0.1 * jax.random.normal(keys[2], (Cout,), dtype=jnp.float32)
    be1 = 0.1 * jax.random.normal(keys[3], (Cout,), dtype=jnp.float32)
    rm1 = 0.1 * jax.random.normal(keys[4], (Cout,), dtype=jnp.float32)
    rv1 = 0.5 + jnp.abs(jax.random.normal(keys[5], (Cout,), dtype=jnp.float32))

    w2 = 0.1 * jax.random.normal(keys[6], (Cout, Cout, 3, 3), dtype=jnp.float32)
    g2 = 1.0 + 0.1 * jax.random.normal(keys[7], (Cout,), dtype=jnp.float32)
    be2 = 0.1 * jax.random.normal(keys[8], (Cout,), dtype=jnp.float32)
    rm2 = 0.1 * jax.random.normal(keys[9], (Cout,), dtype=jnp.float32)
    rv2 = 0.5 + jnp.abs(jax.random.normal(keys[10], (Cout,), dtype=jnp.float32))

    out = double_conv(x, w1, g1, be1, rm1, rv1, w2, g2, be2, rm2, rv2)
    out = jax.block_until_ready(out)
    assert out.shape == (B, Cout, H, W) and out.dtype == jnp.float32

    # Cross-check against a pure-JAX f32 reference (kernel uses bf16 operands
    # with f32 accumulation, so tolerance is loosened accordingly).
    eps = 1e-5
    inv1 = g1 / jnp.sqrt(rv1 + eps)
    inv2 = g2 / jnp.sqrt(rv2 + eps)
    ref = _ref_forward(x, w1, inv1, be1 - rm1 * inv1, w2, inv2, be2 - rm2 * inv2)
    max_diff = float(jnp.max(jnp.abs(out - ref)))
    assert jnp.allclose(out, ref, atol=2e-2, rtol=2e-2), (
        f"mismatch vs reference, max abs diff = {max_diff}")

    print("KERNEL_OK")
</pallas_src>

<mosaic_0001>
module attributes {stable_mosaic.version = 11 : i64} {
  func.func @_double_conv_kernel(%arg0: i32, %arg1: memref<1x8x290xbf16, #tpu.memory_space<vmem>>, %arg2: memref<8x72xbf16, #tpu.memory_space<vmem>>, %arg3: memref<8x1xf32, #tpu.memory_space<vmem>>, %arg4: memref<8x72xbf16, #tpu.memory_space<vmem>>, %arg5: memref<8x1xf32, #tpu.memory_space<vmem>>, %arg6: memref<1x8x256xf32, #tpu.memory_space<vmem>>, %arg7: memref<72x256xbf16, #tpu.memory_space<vmem>>, %arg8: memref<8x401xbf16, #tpu.memory_space<vmem>>, %arg9: memref<72x256xbf16, #tpu.memory_space<vmem>>) attributes {dimension_semantics = [#tpu.dimension_semantics<parallel>], iteration_bounds = array<i64: 2>, scalar_prefetch = 0 : i64, scratch_operands = 3 : i64, tpu.core_type = #tpu.core_type<tc>, window_params = [{transform_indices = @transform_0, window_bounds = array<i64: 1, 8, 290>}, {pipeline_mode = #tpu.pipeline_mode<synchronous>, transform_indices = @transform_1, window_bounds = array<i64: 8, 72>}, {pipeline_mode = #tpu.pipeline_mode<synchronous>, transform_indices = @transform_2, window_bounds = array<i64: 8, 1>}, {pipeline_mode = #tpu.pipeline_mode<synchronous>, transform_indices = @transform_3, window_bounds = array<i64: 8, 72>}, {pipeline_mode = #tpu.pipeline_mode<synchronous>, transform_indices = @transform_4, window_bounds = array<i64: 8, 1>}, {transform_indices = @transform_5, window_bounds = array<i64: 1, 8, 256>}]} {
    %0 = tpu.iota {dimensions = array<i32: 1>} : vector<1x256xi32>
    %c16_i32 = arith.constant 16 : i32
    %c0_i32 = arith.constant 0 : i32
    %1 = arith.cmpi eq, %c16_i32, %c0_i32 : i32
    %c1_i32 = arith.constant 1 : i32
    %2 = arith.select %1, %c1_i32, %c16_i32 : i32
    %3 = vector.broadcast %2 : i32 to vector<1x256xi32>
    %4 = arith.remsi %0, %3 : vector<1x256xi32>
    %c0_i32_0 = arith.constant 0 : i32
    %5 = vector.broadcast %c0_i32_0 : i32 to vector<1x256xi32>
    %6 = arith.cmpi ne, %4, %5 : vector<1x256xi32>
    %c0_i32_1 = arith.constant 0 : i32
    %7 = vector.broadcast %c0_i32_1 : i32 to vector<1x256xi32>
    %8 = arith.cmpi slt, %4, %7 : vector<1x256xi32>
    %c0_i32_2 = arith.constant 0 : i32
    %9 = arith.cmpi slt, %2, %c0_i32_2 : i32
    %10 = vector.broadcast %9 : i1 to vector<1x256xi1>
    %11 = vector.broadcast %10 : vector<1x256xi1> to vector<1x256xi1>
    %12 = arith.xori %8, %11 : vector<1x256xi1>
    %13 = arith.andi %12, %6 : vector<1x256xi1>
    %14 = vector.broadcast %2 : i32 to vector<1x256xi32>
    %15 = arith.addi %4, %14 : vector<1x256xi32>
    %16 = arith.select %13, %15, %4 : vector<1x256xi1>, vector<1x256xi32>
    %c0_i32_3 = arith.constant 0 : i32
    %17 = vector.broadcast %c0_i32_3 : i32 to vector<1x256xi32>
    %18 = arith.cmpi ne, %16, %17 : vector<1x256xi32>
    %c15_i32 = arith.constant 15 : i32
    %19 = vector.broadcast %c15_i32 : i32 to vector<1x256xi32>
    %20 = arith.cmpi ne, %16, %19 : vector<1x256xi32>
    %c0_i32_4 = arith.constant 0 : i32
    %c0_i32_5 = arith.constant 0 : i32
    %c0_i32_6 = arith.constant 0 : i32
    %21 = tpu.memref_slice %arg1[%c0_i32_4, %c0_i32_5, %c0_i32_6] : memref<1x8x290xbf16, #tpu.memory_space<vmem>> -> memref<1x8x290xbf16, #tpu.memory_space<vmem>>
    %22 = tpu.memref_squeeze %21 : memref<1x8x290xbf16, #tpu.memory_space<vmem>> -> memref<8x290xbf16, #tpu.memory_space<vmem>>
    %c0 = arith.constant 0 : index
    %c0_7 = arith.constant 0 : index
    %23 = vector.load %22[%c0, %c0_7] : memref<8x290xbf16, #tpu.memory_space<vmem>>, vector<8x256xbf16>
    %cst = arith.constant 0.000000e+00 : bf16
    %24 = vector.broadcast %cst : bf16 to vector<8x256xbf16>
    %25 = vector.shape_cast %18 : vector<1x256xi1> to vector<1x256xi1>
    %26 = vector.broadcast %25 : vector<1x256xi1> to vector<8x256xi1>
    %27 = arith.select %26, %23, %24 : vector<8x256xi1>, vector<8x256xbf16>
    %c0_8 = arith.constant 0 : index
    %c0_9 = arith.constant 0 : index
    %28 = vector.load %arg7[%c0_8, %c0_9] : memref<72x256xbf16, #tpu.memory_space<vmem>>, vector<8x256xbf16>
    tpu.vector_store %arg7[%c0_8, %c0_9], %27 {strides = array<i32>} : memref<72x256xbf16, #tpu.memory_space<vmem>>, vector<8x256xbf16>,
    %c0_i32_10 = arith.constant 0 : i32
    %c0_i32_11 = arith.constant 0 : i32
    %c0_i32_12 = arith.constant 0 : i32
    %29 = tpu.memref_slice %arg1[%c0_i32_10, %c0_i32_11, %c0_i32_12] : memref<1x8x290xbf16, #tpu.memory_space<vmem>> -> memref<1x8x290xbf16, #tpu.memory_space<vmem>>
    %30 = tpu.memref_squeeze %29 : memref<1x8x290xbf16, #tpu.memory_space<vmem>> -> memref<8x290xbf16, #tpu.memory_space<vmem>>
    %c0_13 = arith.constant 0 : index
    %c1 = arith.constant 1 : index
    %31 = vector.load %30[%c0_13, %c1] : memref<8x290xbf16, #tpu.memory_space<vmem>>, vector<8x256xbf16>
    %c8 = arith.constant 8 : index
    %c0_14 = arith.constant 0 : index
    %32 = vector.load %arg7[%c8, %c0_14] : memref<72x256xbf16, #tpu.memory_space<vmem>>, vector<8x256xbf16>
    tpu.vector_store %arg7[%c8, %c0_14], %31 {strides = array<i32>} : memref<72x256xbf16, #tpu.memory_space<vmem>>, vector<8x256xbf16>,
    %c0_i32_15 = arith.constant 0 : i32
    %c0_i32_16 = arith.constant 0 : i32
    %c0_i32_17 = arith.constant 0 : i32
    %33 = tpu.memref_slice %arg1[%c0_i32_15, %c0_i32_16, %c0_i32_17] : memref<1x8x290xbf16, #tpu.memory_space<vmem>> -> memref<1x8x290xbf16, #tpu.memory_space<vmem>>
    %34 = tpu.memref_squeeze %33 : memref<1x8x290xbf16, #tpu.memory_space<vmem>> -> memref<8x290xbf16, #tpu.memory_space<vmem>>
    %c0_18 = arith.constant 0 : index
    %c2 = arith.constant 2 : index
    %35 = vector.load %34[%c0_18, %c2] : memref<8x290xbf16, #tpu.memory_space<vmem>>, vector<8x256xbf16>
    %cst_19 = arith.constant 0.000000e+00 : bf16
    %36 = vector.broadcast %cst_19 : bf16 to vector<8x256xbf16>
    %37 = vector.shape_cast %20 : vector<1x256xi1> to vector<1x256xi1>
    %38 = vector.broadcast %37 : vector<1x256xi1> to vector<8x256xi1>
    %39 = arith.select %38, %35, %36 : vector<8x256xi1>, vector<8x256xbf16>
    %c16 = arith.constant 16 : index
    %c0_20 = arith.constant 0 : index
    %40 = vector.load %arg7[%c16, %c0_20] : memref<72x256xbf16, #tpu.memory_space<vmem>>, vector<8x256xbf16>
    tpu.vector_store %arg7[%c16, %c0_20], %39 {strides = array<i32>} : memref<72x256xbf16, #tpu.memory_space<vmem>>, vector<8x256xbf16>,
    %c0_i32_21 = arith.constant 0 : i32
    %c0_i32_22 = arith.constant 0 : i32
    %c0_i32_23 = arith.constant 0 : i32
    %41 = tpu.memref_slice %arg1[%c0_i32_21, %c0_i32_22, %c0_i32_23] : memref<1x8x290xbf16, #tpu.memory_space<vmem>> -> memref<1x8x290xbf16, #tpu.memory_space<vmem>>
    %42 = tpu.memref_squeeze %41 : memref<1x8x290xbf16, #tpu.memory_space<vmem>> -> memref<8x290xbf16, #tpu.memory_space<vmem>>
    %c0_24 = arith.constant 0 : index
    %c16_25 = arith.constant 16 : index
    %43 = vector.load %42[%c0_24, %c16_25] : memref<8x290xbf16, #tpu.memory_space<vmem>>, vector<8x256xbf16>
    %cst_26 = arith.constant 0.000000e+00 : bf16
    %44 = vector.broadcast %cst_26 : bf16 to vector<8x256xbf16>
    %45 = vector.shape_cast %18 : vector<1x256xi1> to vector<1x256xi1>
    %46 = vector.broadcast %45 : vector<1x256xi1> to vector<8x256xi1>
    %47 = arith.select %46, %43, %44 : vector<8x256xi1>, vector<8x256xbf16>
    %c24 = arith.constant 24 : index
    %c0_27 = arith.constant 0 : index
    %48 = vector.load %arg7[%c24, %c0_27] : memref<72x256xbf16, #tpu.memory_space<vmem>>, vector<8x256xbf16>
    tpu.vector_store %arg7[%c24, %c0_27], %47 {strides = array<i32>} : memref<72x256xbf16, #tpu.memory_space<vmem>>, vector<8x256xbf16>,
    %c0_i32_28 = arith.constant 0 : i32
    %c0_i32_29 = arith.constant 0 : i32
    %c0_i32_30 = arith.constant 0 : i32
    %49 = tpu.memref_slice %arg1[%c0_i32_28, %c0_i32_29, %c0_i32_30] : memref<1x8x290xbf16, #tpu.memory_space<vmem>> -> memref<1x8x290xbf16, #tpu.memory_space<vmem>>
    %50 = tpu.memref_squeeze %49 : memref<1x8x290xbf16, #tpu.memory_space<vmem>> -> memref<8x290xbf16, #tpu.memory_space<vmem>>
    %c0_31 = arith.constant 0 : index
    %c17 = arith.constant 17 : index
    %51 = vector.load %50[%c0_31, %c17] : memref<8x290xbf16, #tpu.memory_space<vmem>>, vector<8x256xbf16>
    %c32 = arith.constant 32 : index
    %c0_32 = arith.constant 0 : index
    %52 = vector.load %arg7[%c32, %c0_32] : memref<72x256xbf16, #tpu.memory_space<vmem>>, vector<8x256xbf16>
    tpu.vector_store %arg7[%c32, %c0_32], %51 {strides = array<i32>} : memref<72x256xbf16, #tpu.memory_space<vmem>>, vector<8x256xbf16>,
    %c0_i32_33 = arith.constant 0 : i32
    %c0_i32_34 = arith.constant 0 : i32
    %c0_i32_35 = arith.constant 0 : i32
    %53 = tpu.memref_slice %arg1[%c0_i32_33, %c0_i32_34, %c0_i32_35] : memref<1x8x290xbf16, #tpu.memory_space<vmem>> -> memref<1x8x290xbf16, #tpu.memory_space<vmem>>
    %54 = tpu.memref_squeeze %53 : memref<1x8x290xbf16, #tpu.memory_space<vmem>> -> memref<8x290xbf16, #tpu.memory_space<vmem>>
    %c0_36 = arith.constant 0 : index
    %c18 = arith.constant 18 : index
    %55 = vector.load %54[%c0_36, %c18] : memref<8x290xbf16, #tpu.memory_space<vmem>>, vector<8x256xbf16>
    %cst_37 = arith.constant 0.000000e+00 : bf16
    %56 = vector.broadcast %cst_37 : bf16 to vector<8x256xbf16>
    %57 = vector.shape_cast %20 : vector<1x256xi1> to vector<1x256xi1>
    %58 = vector.broadcast %57 : vector<1x256xi1> to vector<8x256xi1>
    %59 = arith.select %58, %55, %56 : vector<8x256xi1>, vector<8x256xbf16>
    %c40 = arith.constant 40 : index
    %c0_38 = arith.constant 0 : index
    %60 = vector.load %arg7[%c40, %c0_38] : memref<72x256xbf16, #tpu.memory_space<vmem>>, vector<8x256xbf16>
    tpu.vector_store %arg7[%c40, %c0_38], %59 {strides = array<i32>} : memref<72x256xbf16, #tpu.memory_space<vmem>>, vector<8x256xbf16>,
    %c0_i32_39 = arith.constant 0 : i32
    %c0_i32_40 = arith.constant 0 : i32
    %c0_i32_41 = arith.constant 0 : i32
    %61 = tpu.memref_slice %arg1[%c0_i32_39, %c0_i32_40, %c0_i32_41] : memref<1x8x290xbf16, #tpu.memory_space<vmem>> -> memref<1x8x290xbf16, #tpu.memory_space<vmem>>
    %62 = tpu.memref_squeeze %61 : memref<1x8x290xbf16, #tpu.memory_space<vmem>> -> memref<8x290xbf16, #tpu.memory_space<vmem>>
    %c0_42 = arith.constant 0 : index
    %c32_43 = arith.constant 32 : index
    %63 = vector.load %62[%c0_42, %c32_43] : memref<8x290xbf16, #tpu.memory_space<vmem>>, vector<8x256xbf16>
    %cst_44 = arith.constant 0.000000e+00 : bf16
    %64 = vector.broadcast %cst_44 : bf16 to vector<8x256xbf16>
    %65 = vector.shape_cast %18 : vector<1x256xi1> to vector<1x256xi1>
    %66 = vector.broadcast %65 : vector<1x256xi1> to vector<8x256xi1>
    %67 = arith.select %66, %63, %64 : vector<8x256xi1>, vector<8x256xbf16>
    %c48 = arith.constant 48 : index
    %c0_45 = arith.constant 0 : index
    %68 = vector.load %arg7[%c48, %c0_45] : memref<72x256xbf16, #tpu.memory_space<vmem>>, vector<8x256xbf16>
    tpu.vector_store %arg7[%c48, %c0_45], %67 {strides = array<i32>} : memref<72x256xbf16, #tpu.memory_space<vmem>>, vector<8x256xbf16>,
    %c0_i32_46 = arith.constant 0 : i32
    %c0_i32_47 = arith.constant 0 : i32
    %c0_i32_48 = arith.constant 0 : i32
    %69 = tpu.memref_slice %arg1[%c0_i32_46, %c0_i32_47, %c0_i32_48] : memref<1x8x290xbf16, #tpu.memory_space<vmem>> -> memref<1x8x290xbf16, #tpu.memory_space<vmem>>
    %70 = tpu.memref_squeeze %69 : memref<1x8x290xbf16, #tpu.memory_space<vmem>> -> memref<8x290xbf16, #tpu.memory_space<vmem>>
    %c0_49 = arith.constant 0 : index
    %c33 = arith.constant 33 : index
    %71 = vector.load %70[%c0_49, %c33] : memref<8x290xbf16, #tpu.memory_space<vmem>>, vector<8x256xbf16>
    %c56 = arith.constant 56 : index
    %c0_50 = arith.constant 0 : index
    %72 = vector.load %arg7[%c56, %c0_50] : memref<72x256xbf16, #tpu.memory_space<vmem>>, vector<8x256xbf16>
    tpu.vector_store %arg7[%c56, %c0_50], %71 {strides = array<i32>} : memref<72x256xbf16, #tpu.memory_space<vmem>>, vector<8x256xbf16>,
    %c0_i32_51 = arith.constant 0 : i32
    %c0_i32_52 = arith.constant 0 : i32
    %c0_i32_53 = arith.constant 0 : i32
    %73 = tpu.memref_slice %arg1[%c0_i32_51, %c0_i32_52, %c0_i32_53] : memref<1x8x290xbf16, #tpu.memory_space<vmem>> -> memref<1x8x290xbf16, #tpu.memory_space<vmem>>
    %74 = tpu.memref_squeeze %73 : memref<1x8x290xbf16, #tpu.memory_space<vmem>> -> memref<8x290xbf16, #tpu.memory_space<vmem>>
    %c0_54 = arith.constant 0 : index
    %c34 = arith.constant 34 : index
    %75 = vector.load %74[%c0_54, %c34] : memref<8x290xbf16, #tpu.memory_space<vmem>>, vector<8x256xbf16>
    %cst_55 = arith.constant 0.000000e+00 : bf16
    %76 = vector.broadcast %cst_55 : bf16 to vector<8x256xbf16>
    %77 = vector.shape_cast %20 : vector<1x256xi1> to vector<1x256xi1>
    %78 = vector.broadcast %77 : vector<1x256xi1> to vector<8x256xi1>
    %79 = arith.select %78, %75, %76 : vector<8x256xi1>, vector<8x256xbf16>
    %c64 = arith.constant 64 : index
    %c0_56 = arith.constant 0 : index
    %80 = vector.load %arg7[%c64, %c0_56] : memref<72x256xbf16, #tpu.memory_space<vmem>>, vector<8x256xbf16>
    tpu.vector_store %arg7[%c64, %c0_56], %79 {strides = array<i32>} : memref<72x256xbf16, #tpu.memory_space<vmem>>, vector<8x256xbf16>,
    %c0_57 = arith.constant 0 : index
    %c0_58 = arith.constant 0 : index
    %81 = vector.load %arg2[%c0_57, %c0_58] : memref<8x72xbf16, #tpu.memory_space<vmem>>, vector<8x72xbf16>
    %c0_59 = arith.constant 0 : index
    %c0_60 = arith.constant 0 : index
    %82 = vector.load %arg7[%c0_59, %c0_60] : memref<72x256xbf16, #tpu.memory_space<vmem>>, vector<72x256xbf16>
    %cst_61 = arith.constant dense<0.000000e+00> : vector<8x256xf32>
    %83 = tpu.matmul %81, %82, %cst_61 {dimension_numbers = #tpu.dot_dimension_numbers<[1], [0], [0], [1], [0, 0, 1, 1], [], []>} : vector<8x72xbf16>, vector<72x256xbf16>, vector<8x256xf32> -> vector<8x256xf32>
    %c0_62 = arith.constant 0 : index
    %c0_63 = arith.constant 0 : index
    %84 = vector.load %arg3[%c0_62, %c0_63] : memref<8x1xf32, #tpu.memory_space<vmem>>, vector<8x1xf32>
    %85 = vector.broadcast %84 : vector<8x1xf32> to vector<8x256xf32>
    %86 = arith.addf %83, %85 : vector<8x256xf32>
    %cst_64 = arith.constant 0.000000e+00 : f32
    %87 = vector.broadcast %cst_64 : f32 to vector<8x256xf32>
    %88 = arith.maximumf %86, %87 : vector<8x256xf32>
    %89 = arith.truncf %88 : vector<8x256xf32> to vector<8x256xbf16>
    %cst_65 = arith.constant 0.000000e+00 : bf16
    %90 = vector.broadcast %cst_65 : bf16 to vector<8x128xbf16>
    %c0_66 = arith.constant 0 : index
    %c0_67 = arith.constant 0 : index
    %91 = vector.load %arg8[%c0_66, %c0_67] : memref<8x401xbf16, #tpu.memory_space<vmem>>, vector<8x128xbf16>
    tpu.vector_store %arg8[%c0_66, %c0_67], %90 {strides = array<i32>} : memref<8x401xbf16, #tpu.memory_space<vmem>>, vector<8x128xbf16>,
    %cst_68 = arith.constant 0.000000e+00 : bf16
    %92 = vector.broadcast %cst_68 : bf16 to vector<8x17xbf16>
    %c0_69 = arith.constant 0 : index
    %c384 = arith.constant 384 : index
    %93 = vector.load %arg8[%c0_69, %c384] : memref<8x401xbf16, #tpu.memory_space<vmem>>, vector<8x17xbf16>
    tpu.vector_store %arg8[%c0_69, %c384], %92 {strides = array<i32>} : memref<8x401xbf16, #tpu.memory_space<vmem>>, vector<8x17xbf16>,
    %c0_70 = arith.constant 0 : index
    %c128 = arith.constant 128 : index
    %94 = vector.load %arg8[%c0_70, %c128] : memref<8x401xbf16, #tpu.memory_space<vmem>>, vector<8x256xbf16>
    tpu.vector_store %arg8[%c0_70, %c128], %89 {strides = array<i32>} : memref<8x401xbf16, #tpu.memory_space<vmem>>, vector<8x256xbf16>,
    %c0_71 = arith.constant 0 : index
    %c111 = arith.constant 111 : index
    %95 = vector.load %arg8[%c0_71, %c111] : memref<8x401xbf16, #tpu.memory_space<vmem>>, vector<8x256xbf16>
    %cst_72 = arith.constant 0.000000e+00 : bf16
    %96 = vector.broadcast %cst_72 : bf16 to vector<8x256xbf16>
    %97 = vector.shape_cast %18 : vector<1x256xi1> to vector<1x256xi1>
    %98 = vector.broadcast %97 : vector<1x256xi1> to vector<8x256xi1>
    %99 = arith.select %98, %95, %96 : vector<8x256xi1>, vector<8x256xbf16>
    %c0_73 = arith.constant 0 : index
    %c0_74 = arith.constant 0 : index
    %100 = vector.load %arg9[%c0_73, %c0_74] : memref<72x256xbf16, #tpu.memory_space<vmem>>, vector<8x256xbf16>
    tpu.vector_store %arg9[%c0_73, %c0_74], %99 {strides = array<i32>} : memref<72x256xbf16, #tpu.memory_space<vmem>>, vector<8x256xbf16>,
    %c0_75 = arith.constant 0 : index
    %c112 = arith.constant 112 : index
    %101 = vector.load %arg8[%c0_75, %c112] : memref<8x401xbf16, #tpu.memory_space<vmem>>, vector<8x256xbf16>
    %c8_76 = arith.constant 8 : index
    %c0_77 = arith.constant 0 : index
    %102 = vector.load %arg9[%c8_76, %c0_77] : memref<72x256xbf16, #tpu.memory_space<vmem>>, vector<8x256xbf16>
    tpu.vector_store %arg9[%c8_76, %c0_77], %101 {strides = array<i32>} : memref<72x256xbf16, #tpu.memory_space<vmem>>, vector<8x256xbf16>,
    %c0_78 = arith.constant 0 : index
    %c113 = arith.constant 113 : index
    %103 = vector.load %arg8[%c0_78, %c113] : memref<8x401xbf16, #tpu.memory_space<vmem>>, vector<8x256xbf16>
    %cst_79 = arith.constant 0.000000e+00 : bf16
    %104 = vector.broadcast %cst_79 : bf16 to vector<8x256xbf16>
    %105 = vector.shape_cast %20 : vector<1x256xi1> to vector<1x256xi1>
    %106 = vector.broadcast %105 : vector<1x256xi1> to vector<8x256xi1>
    %107 = arith.select %106, %103, %104 : vector<8x256xi1>, vector<8x256xbf16>
    %c16_80 = arith.constant 16 : index
    %c0_81 = arith.constant 0 : index
    %108 = vector.load %arg9[%c16_80, %c0_81] : memref<72x256xbf16, #tpu.memory_space<vmem>>, vector<8x256xbf16>
    tpu.vector_store %arg9[%c16_80, %c0_81], %107 {strides = array<i32>} : memref<72x256xbf16, #tpu.memory_space<vmem>>, vector<8x256xbf16>,
    %c0_82 = arith.constant 0 : index
    %c127 = arith.constant 127 : index
    %109 = vector.load %arg8[%c0_82, %c127] : memref<8x401xbf16, #tpu.memory_space<vmem>>, vector<8x256xbf16>
    %cst_83 = arith.constant 0.000000e+00 : bf16
    %110 = vector.broadcast %cst_83 : bf16 to vector<8x256xbf16>
    %111 = vector.shape_cast %18 : vector<1x256xi1> to vector<1x256xi1>
    %112 = vector.broadcast %111 : vector<1x256xi1> to vector<8x256xi1>
    %113 = arith.select %112, %109, %110 : vector<8x256xi1>, vector<8x256xbf16>
    %c24_84 = arith.constant 24 : index
    %c0_85 = arith.constant 0 : index
    %114 = vector.load %arg9[%c24_84, %c0_85] : memref<72x256xbf16, #tpu.memory_space<vmem>>, vector<8x256xbf16>
    tpu.vector_store %arg9[%c24_84, %c0_85], %113 {strides = array<i32>} : memref<72x256xbf16, #tpu.memory_space<vmem>>, vector<8x256xbf16>,
    %c0_86 = arith.constant 0 : index
    %c128_87 = arith.constant 128 : index
    %115 = vector.load %arg8[%c0_86, %c128_87] : memref<8x401xbf16, #tpu.memory_space<vmem>>, vector<8x256xbf16>
    %c32_88 = arith.constant 32 : index
    %c0_89 = arith.constant 0 : index
    %116 = vector.load %arg9[%c32_88, %c0_89] : memref<72x256xbf16, #tpu.memory_space<vmem>>, vector<8x256xbf16>
    tpu.vector_store %arg9[%c32_88, %c0_89], %115 {strides = array<i32>} : memref<72x256xbf16, #tpu.memory_space<vmem>>, vector<8x256xbf16>,
    %c0_90 = arith.constant 0 : index
    %c129 = arith.constant 129 : index
    %117 = vector.load %arg8[%c0_90, %c129] : memref<8x401xbf16, #tpu.memory_space<vmem>>, vector<8x256xbf16>
    %cst_91 = arith.constant 0.000000e+00 : bf16
    %118 = vector.broadcast %cst_91 : bf16 to vector<8x256xbf16>
    %119 = vector.shape_cast %20 : vector<1x256xi1> to vector<1x256xi1>
    %120 = vector.broadcast %119 : vector<1x256xi1> to vector<8x256xi1>
    %121 = arith.select %120, %117, %118 : vector<8x256xi1>, vector<8x256xbf16>
    %c40_92 = arith.constant 40 : index
    %c0_93 = arith.constant 0 : index
    %122 = vector.load %arg9[%c40_92, %c0_93] : memref<72x256xbf16, #tpu.memory_space<vmem>>, vector<8x256xbf16>
    tpu.vector_store %arg9[%c40_92, %c0_93], %121 {strides = array<i32>} : memref<72x256xbf16, #tpu.memory_space<vmem>>, vector<8x256xbf16>,
    %c0_94 = arith.constant 0 : index
    %c143 = arith.constant 143 : index
    %123 = vector.load %arg8[%c0_94, %c143] : memref<8x401xbf16, #tpu.memory_space<vmem>>, vector<8x256xbf16>
    %cst_95 = arith.constant 0.000000e+00 : bf16
    %124 = vector.broadcast %cst_95 : bf16 to vector<8x256xbf16>
    %125 = vector.shape_cast %18 : vector<1x256xi1> to vector<1x256xi1>
    %126 = vector.broadcast %125 : vector<1x256xi1> to vector<8x256xi1>
    %127 = arith.select %126, %123, %124 : vector<8x256xi1>, vector<8x256xbf16>
    %c48_96 = arith.constant 48 : index
    %c0_97 = arith.constant 0 : index
    %128 = vector.load %arg9[%c48_96, %c0_97] : memref<72x256xbf16, #tpu.memory_space<vmem>>, vector<8x256xbf16>
    tpu.vector_store %arg9[%c48_96, %c0_97], %127 {strides = array<i32>} : memref<72x256xbf16, #tpu.memory_space<vmem>>, vector<8x256xbf16>,
    %c0_98 = arith.constant 0 : index
    %c144 = arith.constant 144 : index
    %129 = vector.load %arg8[%c0_98, %c144] : memref<8x401xbf16, #tpu.memory_space<vmem>>, vector<8x256xbf16>
    %c56_99 = arith.constant 56 : index
    %c0_100 = arith.constant 0 : index
    %130 = vector.load %arg9[%c56_99, %c0_100] : memref<72x256xbf16, #tpu.memory_space<vmem>>, vector<8x256xbf16>
    tpu.vector_store %arg9[%c56_99, %c0_100], %129 {strides = array<i32>} : memref<72x256xbf16, #tpu.memory_space<vmem>>, vector<8x256xbf16>,
    %c0_101 = arith.constant 0 : index
    %c145 = arith.constant 145 : index
    %131 = vector.load %arg8[%c0_101, %c145] : memref<8x401xbf16, #tpu.memory_space<vmem>>, vector<8x256xbf16>
    %cst_102 = arith.constant 0.000000e+00 : bf16
    %132 = vector.broadcast %cst_102 : bf16 to vector<8x256xbf16>
    %133 = vector.shape_cast %20 : vector<1x256xi1> to vector<1x256xi1>
    %134 = vector.broadcast %133 : vector<1x256xi1> to vector<8x256xi1>
    %135 = arith.select %134, %131, %132 : vector<8x256xi1>, vector<8x256xbf16>
    %c64_103 = arith.constant 64 : index
    %c0_104 = arith.constant 0 : index
    %136 = vector.load %arg9[%c64_103, %c0_104] : memref<72x256xbf16, #tpu.memory_space<vmem>>, vector<8x256xbf16>
    tpu.vector_store %arg9[%c64_103, %c0_104], %135 {strides = array<i32>} : memref<72x256xbf16, #tpu.memory_space<vmem>>, vector<8x256xbf16>,
    %c0_105 = arith.constant 0 : index
    %c0_106 = arith.constant 0 : index
    %137 = vector.load %arg4[%c0_105, %c0_106] : memref<8x72xbf16, #tpu.memory_space<vmem>>, vector<8x72xbf16>
    %c0_107 = arith.constant 0 : index
    %c0_108 = arith.constant 0 : index
    %138 = vector.load %arg9[%c0_107, %c0_108] : memref<72x256xbf16, #tpu.memory_space<vmem>>, vector<72x256xbf16>
    %cst_109 = arith.constant dense<0.000000e+00> : vector<8x256xf32>
    %139 = tpu.matmul %137, %138, %cst_109 {dimension_numbers = #tpu.dot_dimension_numbers<[1], [0], [0], [1], [0, 0, 1, 1], [], []>} : vector<8x72xbf16>, vector<72x256xbf16>, vector<8x256xf32> -> vector<8x256xf32>
    %c0_110 = arith.constant 0 : index
    %c0_111 = arith.constant 0 : index
    %140 = vector.load %arg5[%c0_110, %c0_111] : memref<8x1xf32, #tpu.memory_space<vmem>>, vector<8x1xf32>
    %141 = vector.broadcast %140 : vector<8x1xf32> to vector<8x256xf32>
    %142 = arith.addf %139, %141 : vector<8x256xf32>
    %cst_112 = arith.constant 0.000000e+00 : f32
    %143 = vector.broadcast %cst_112 : f32 to vector<8x256xf32>
    %144 = arith.maximumf %142, %143 : vector<8x256xf32>
    %c0_113 = arith.constant 0 : index
    %c0_114 = arith.constant 0 : index
    %c0_115 = arith.constant 0 : index
    %145 = vector.load %arg6[%c0_113, %c0_114, %c0_115] : memref<1x8x256xf32, #tpu.memory_space<vmem>>, vector<1x8x256xf32>
    %146 = vector.shape_cast %145 : vector<1x8x256xf32> to vector<8x256xf32>
    %147 = vector.shape_cast %144 : vector<8x256xf32> to vector<1x8x256xf32>
    tpu.vector_store %arg6[%c0_113, %c0_114, %c0_115], %147 {strides = array<i32>} : memref<1x8x256xf32, #tpu.memory_space<vmem>>, vector<1x8x256xf32>,
    return
  }
  func.func @transform_0(%arg0: i32) -> (i32, i32, i32) {
    %c0_i32 = arith.constant 0 : i32
    %c0_i32_0 = arith.constant 0 : i32
    %c0_i32_1 = arith.constant 0 : i32
    return %arg0, %c0_i32, %c0_i32_0 : i32, i32, i32
  }
  func.func @transform_1(%arg0: i32) -> (i32, i32) {
    %c0_i32 = arith.constant 0 : i32
    %c0_i32_0 = arith.constant 0 : i32
    %c0_i32_1 = arith.constant 0 : i32
    return %c0_i32, %c0_i32_0 : i32, i32
  }
  func.func @transform_2(%arg0: i32) -> (i32, i32) {
    %c0_i32 = arith.constant 0 : i32
    %c0_i32_0 = arith.constant 0 : i32
    %c0_i32_1 = arith.constant 0 : i32
    return %c0_i32, %c0_i32_0 : i32, i32
  }
  func.func @transform_3(%arg0: i32) -> (i32, i32) {
    %c0_i32 = arith.constant 0 : i32
    %c0_i32_0 = arith.constant 0 : i32
    %c0_i32_1 = arith.constant 0 : i32
    return %c0_i32, %c0_i32_0 : i32, i32
  }
  func.func @transform_4(%arg0: i32) -> (i32, i32) {
    %c0_i32 = arith.constant 0 : i32
    %c0_i32_0 = arith.constant 0 : i32
    %c0_i32_1 = arith.constant 0 : i32
    return %c0_i32, %c0_i32_0 : i32, i32
  }
  func.func @transform_5(%arg0: i32) -> (i32, i32, i32) {
    %c0_i32 = arith.constant 0 : i32
    %c0_i32_0 = arith.constant 0 : i32
    %c0_i32_1 = arith.constant 0 : i32
    return %arg0, %c0_i32, %c0_i32_0 : i32, i32, i32
  }
}

</mosaic_0001>

<llo_original>
// kernel: tpu_custom_call.1
$region0: #{tpu_custom_call.1}
  #allocation0 [shape = 'u32[]', space=smem, size = 0x4, offset = 0x4, fixed_abs, tag = 'smem constant byte address 0x4 - core index']
  #allocation1 [shape = 'u32[144,128]{1,0:T(1,128)}', space=vmem, size = 0x12000, scoped, tag = 'internal scratch']
  #allocation2 [shape = 'bf16[72,256]{1,0:T(8,128)(2,1)}', space=vmem, size = 0x9000, scoped, tag = 'scratch operand']
  #allocation3 [shape = 'bf16[8,401]{1,0:T(8,128)(2,1)}', space=vmem, size = 0x2000, scoped, tag = 'scratch operand']
  #allocation4 [shape = 'bf16[72,256]{1,0:T(8,128)(2,1)}', space=vmem, size = 0x9000, scoped, tag = 'scratch operand']
  %s0 = inlined_call_operand.hbm [shape: bf16[2,8,290], index: 0, kind: input, shape index: {}]
  %s1 = inlined_call_operand.vmem [shape: bf16[8,72], index: 1, kind: input, shape index: {}]
  %s2 = inlined_call_operand.vmem [shape: f32[8,1], index: 2, kind: input, shape index: {}]
  %s3 = inlined_call_operand.vmem [shape: bf16[8,72], index: 3, kind: input, shape index: {}]
  %s4 = inlined_call_operand.vmem [shape: f32[8,1], index: 4, kind: input, shape index: {}]
  %s5 = inlined_call_operand.hbm [shape: f32[2,8,256], index: 5, kind: output, shape index: {}]
  %s6 = sld [smem:[#allocation0]]
  $region57: #{tpu_custom_call.1} parent=0
    _
  %s8 = ssub.s32 1, %s6
  %s9 = scalar_select 0, %s8, %s6
  $region1: #{tpu_custom_call.1} parent=0
    #allocation5 [shape = 'u8[12288]{0}', space=vmem, size = 0x3000, scoped, tag = 'input window, operand 0']
    #allocation6 [shape = 's32[2]{0}', space=sflag, size = 0x8, scoped, tag = 'scoped memory for tpu_custom_call.1']
    #allocation7 [shape = 's32[2]{0}', space=sflag, size = 0x8, scoped, tag = 'scoped memory for tpu_custom_call.1']
    #allocation8 [shape = 'u8[16384]{0}', space=vmem, size = 0x4000, scoped, tag = 'output window, operand 0']
    %10 = vsyncpa [#allocation6], 0
    %s11 = scalar_lea.sflag [#allocation6], 1
    %12 = vsyncpa %s11, 0
    %13 = vsyncpa [#allocation7], 0
    %s14 = scalar_lea.sflag [#allocation7], 1
    %15 = vsyncpa %s14, 0
    loop: start=0, step=1, limit=4
    $region2: #{tpu_custom_call.1} parent=1 // loop_pre_header
      _
    $region3: #{tpu_custom_call.1} parent=1 // loop_header
      %s17 = sphi 0, %s21
      %p18 = scmp.ge.s32.totalorder %s17, 4
      %s27 = sphi 0, %s29
      %s30 = sphi 0, %s27
      %s31 = sphi 0, %s30
      %s47 = sphi 0, %s31
      %s51 = sphi 0, %s51
      %s53 = sphi 0, %s51
      %s54 = sphi 0, %s53
      %s68 = sphi 0, %s54
      %s72 = sphi 0, %s72
      %s74 = sphi 0, %s72
      %s75 = sphi 0, %s74
      %s89 = sphi 0, %s75
      %s93 = sphi 0, %s93
      %s95 = sphi 0, %s93
      %s96 = sphi 0, %s95
      %s110 = sphi 0, %s96
      %s114 = sphi 0, %s114
      %s116 = sphi 0, %s114
      %s117 = sphi 0, %s116
      %s131 = sphi 0, %s117
      %s137 = sphi 0, %s139
      %s140 = sphi 0, %s137
      %s141 = sphi 0, %s140
      %s157 = sphi 0, %s141
    $region4: #{tpu_custom_call.1} parent=1 // loop_header_branch
      %20 = sbr.rel (%p18) target = $region8
    $region5: #{tpu_custom_call.1} parent=1 // loop_body
      %s22 = ssub.s32 %s17, 1
      %s23 = ssub.s32 %s17, 2
      %s24 = sadd.s32 %s17, 1
      %s25 = ssub.s32 %s17, %s24
      %p26 = scmp.eq.s32.totalorder %s25, 0
      %s28 = sadd.s32 %s27, 1
      %s29 = scalar_select %p26, %s27, %s28
      %p32 = pneg %p26
      %p33 = scmp.eq.s32.totalorder %s17, 1
      %p34 = por %p32, %p33
      %p35 = scmp.ne.s32.totalorder %s27, %s30
      %p36 = scmp.eq.s32.totalorder %s17, 0
      %p37 = por %p35, %p36
      %p38 = scmp.ne.s32.totalorder %s27, %s30
      %p39 = scmp.eq.s32.totalorder %s22, 1
      %p40 = por %p38, %p39
      %p41 = scmp.ne.s32.totalorder %s30, %s31
      %p42 = scmp.eq.s32.totalorder %s22, 0
      %p43 = por %p41, %p42
      %p44 = scmp.ne.s32.totalorder %s30, %s31
      %p45 = scmp.eq.s32.totalorder %s23, 1
      %p46 = por %p44, %p45
      %p48 = scmp.ne.s32.totalorder %s31, %s47
      %p49 = scmp.eq.s32.totalorder %s23, 0
      %p50 = por %p48, %p49
      %s52 = sadd.s32 %s51, 1
      %p55 = scmp.eq.s32.totalorder %s17, 1
      %p56 = scmp.ne.s32.totalorder %s51, %s53
      %p57 = scmp.eq.s32.totalorder %s17, 0
      %p58 = por %p56, %p57
      %p59 = scmp.ne.s32.totalorder %s51, %s53
      %p60 = scmp.eq.s32.totalorder %s22, 1
      %p61 = por %p59, %p60
      %p62 = scmp.ne.s32.totalorder %s53, %s54
      %p63 = scmp.eq.s32.totalorder %s22, 0
      %p64 = por %p62, %p63
      %p65 = scmp.ne.s32.totalorder %s53, %s54
      %p66 = scmp.eq.s32.totalorder %s23, 1
      %p67 = por %p65, %p66
      %p69 = scmp.ne.s32.totalorder %s54, %s68
      %p70 = scmp.eq.s32.totalorder %s23, 0
      %p71 = por %p69, %p70
      %s73 = sadd.s32 %s72, 1
      %p76 = scmp.eq.s32.totalorder %s17, 1
      %p77 = scmp.ne.s32.totalorder %s72, %s74
      %p78 = scmp.eq.s32.totalorder %s17, 0
      %p79 = por %p77, %p78
      %p80 = scmp.ne.s32.totalorder %s72, %s74
      %p81 = scmp.eq.s32.totalorder %s22, 1
      %p82 = por %p80, %p81
      %p83 = scmp.ne.s32.totalorder %s74, %s75
      %p84 = scmp.eq.s32.totalorder %s22, 0
      %p85 = por %p83, %p84
      %p86 = scmp.ne.s32.totalorder %s74, %s75
      %p87 = scmp.eq.s32.totalorder %s23, 1
      %p88 = por %p86, %p87
      %p90 = scmp.ne.s32.totalorder %s75, %s89
      %p91 = scmp.eq.s32.totalorder %s23, 0
      %p92 = por %p90, %p91
      %s94 = sadd.s32 %s93, 1
      %p97 = scmp.eq.s32.totalorder %s17, 1
      %p98 = scmp.ne.s32.totalorder %s93, %s95
      %p99 = scmp.eq.s32.totalorder %s17, 0
      %p100 = por %p98, %p99
      %p101 = scmp.ne.s32.totalorder %s93, %s95
      %p102 = scmp.eq.s32.totalorder %s22, 1
      %p103 = por %p101, %p102
      %p104 = scmp.ne.s32.totalorder %s95, %s96
      %p105 = scmp.eq.s32.totalorder %s22, 0
      %p106 = por %p104, %p105
      %p107 = scmp.ne.s32.totalorder %s95, %s96
      %p108 = scmp.eq.s32.totalorder %s23, 1
      %p109 = por %p107, %p108
      %p111 = scmp.ne.s32.totalorder %s96, %s110
      %p112 = scmp.eq.s32.totalorder %s23, 0
      %p113 = por %p111, %p112
      %s115 = sadd.s32 %s114, 1
      %p118 = scmp.eq.s32.totalorder %s17, 1
      %p119 = scmp.ne.s32.totalorder %s114, %s116
      %p120 = scmp.eq.s32.totalorder %s17, 0
      %p121 = por %p119, %p120
      %p122 = scmp.ne.s32.totalorder %s114, %s116
      %p123 = scmp.eq.s32.totalorder %s22, 1
      %p124 = por %p122, %p123
      %p125 = scmp.ne.s32.totalorder %s116, %s117
      %p126 = scmp.eq.s32.totalorder %s22, 0
      %p127 = por %p125, %p126
      %p128 = scmp.ne.s32.totalorder %s116, %s117
      %p129 = scmp.eq.s32.totalorder %s23, 1
      %p130 = por %p128, %p129
      %p132 = scmp.ne.s32.totalorder %s117, %s131
      %p133 = scmp.eq.s32.totalorder %s23, 0
      %p134 = por %p132, %p133
      %s135 = ssub.s32 %s17, %s24
      %p136 = scmp.eq.s32.totalorder %s135, 0
      %s138 = sadd.s32 %s137, 1
      %s139 = scalar_select %p136, %s137, %s138
      %p142 = pneg %p136
      %p143 = scmp.eq.s32.totalorder %s17, 1
      %p144 = por %p142, %p143
      %p145 = scmp.ne.s32.totalorder %s137, %s140
      %p146 = scmp.eq.s32.totalorder %s17, 0
      %p147 = por %p145, %p146
      %p148 = scmp.ne.s32.totalorder %s137, %s140
      %p149 = scmp.eq.s32.totalorder %s22, 1
      %p150 = por %p148, %p149
      %p151 = scmp.ne.s32.totalorder %s140, %s141
      %p152 = scmp.eq.s32.totalorder %s22, 0
      %p153 = por %p151, %p152
      %p154 = scmp.ne.s32.totalorder %s140, %s141
      %p155 = scmp.eq.s32.totalorder %s23, 1
      %p156 = por %p154, %p155
      %p158 = scmp.ne.s32.totalorder %s141, %s157
      %p159 = scmp.eq.s32.totalorder %s23, 0
      %p160 = por %p158, %p159
      %p161 = scmp.le.s32.totalorder 1, %s17
      %p162 = scmp.lt.s32.totalorder %s17, 3
      %p163 = pnand %p161, %p162
      %p164 = pneg %p163
      // Predicated region
      $region9: #{tpu_custom_call.1} parent=5 // pred_check
        _
      $region10: #{tpu_custom_call.1} parent=5 // pred_check_branch
        %166 = sbr.rel (%p163) target = $region12
      $region11: #{tpu_custom_call.1} parent=5 // pred_region
        %s167 = ssub.s32 %s17, 1
        // Predicated region
        $region13: #{tpu_custom_call.1} parent=11 // pred_check
          %p168 = pneg %p64
        $region14: #{tpu_custom_call.1} parent=11 // pred_check_branch
          %170 = sbr.rel (%p168) target = $region16
        $region15: #{tpu_custom_call.1} parent=11 // pred_region
          _
        $region16: #{tpu_custom_call.1} parent=11 // pred_fallthru
          _
        // Predicated region
        $region17: #{tpu_custom_call.1} parent=11 // pred_check
          %p171 = pneg %p85
        $region18: #{tpu_custom_call.1} parent=11 // pred_check_branch
          %173 = sbr.rel (%p171) target = $region20
        $region19: #{tpu_custom_call.1} parent=11 // pred_region
          _
        $region20: #{tpu_custom_call.1} parent=11 // pred_fallthru
          _
        // Predicated region
        $region21: #{tpu_custom_call.1} parent=11 // pred_check
          %p174 = pneg %p106
        $region22: #{tpu_custom_call.1} parent=11 // pred_check_branch
          %176 = sbr.rel (%p174) target = $region24
        $region23: #{tpu_custom_call.1} parent=11 // pred_region
          _
        $region24: #{tpu_custom_call.1} parent=11 // pred_fallthru
          _
        // Predicated region
        $region25: #{tpu_custom_call.1} parent=11 // pred_check
          %p177 = pneg %p127
        $region26: #{tpu_custom_call.1} parent=11 // pred_check_branch
          %179 = sbr.rel (%p177) target = $region28
        $region27: #{tpu_custom_call.1} parent=11 // pred_region
          _
        $region28: #{tpu_custom_call.1} parent=11 // pred_fallthru
          _
      $region12: #{tpu_custom_call.1} parent=5 // pred_fallthru
        _
      %p180 = scmp.lt.s32.totalorder %s17, 2
      // Predicated region
      $region29: #{tpu_custom_call.1} parent=5 // pred_check
        %p181 = pneg %p180
      $region30: #{tpu_custom_call.1} parent=5 // pred_check_branch
        %183 = sbr.rel (%p181) target = $region32
      $region31: #{tpu_custom_call.1} parent=5 // pred_region
        // Predicated region
        $region33: #{tpu_custom_call.1} parent=31 // pred_check
          %p184 = pneg %p37
        $region34: #{tpu_custom_call.1} parent=31 // pred_check_branch
          %186 = sbr.rel (%p184) target = $region36
        $region35: #{tpu_custom_call.1} parent=31 // pred_region
          %s187 = sand.u32 %s27, 1
          %s188 = scalar_lea.sflag [#allocation6], %s187
          %s189 = sand.u32 %s27, 1
          %s190 = smul.addr %s189, 12
          %s191 = scalar_lea.vmem [#allocation5], %s190
          %s193 = ssub.s32 192, 192
          %194 = vsyncadd %s188, %s193
          %s195 = smul.addr %s17, 3
          %s196 = smul.addr %s195, 64
          %s197 = scalar_lea.hbm %s0, %s196
          %s199 = sshll.u32 %s191, 4
          %s200 = int_to_ptr.vmem [resolvable:$true] %s199
          %202 = dma.hbm_to_vmem [thread:$0]  %s197, 192, %s200, %s188
        $region36: #{tpu_custom_call.1} parent=31 // pred_fallthru
          _
      $region32: #{tpu_custom_call.1} parent=5 // pred_fallthru
        _
      %p203 = scmp.le.s32.totalorder 1, %s17
      %p204 = scmp.lt.s32.totalorder %s17, 3
      %p205 = pnand %p203, %p204
      %p206 = pneg %p205
      // Predicated region
      $region37: #{tpu_custom_call.1} parent=5 // pred_check
        _
      $region38: #{tpu_custom_call.1} parent=5 // pred_check_branch
        %208 = sbr.rel (%p205) target = $region40
      $region39: #{tpu_custom_call.1} parent=5 // pred_region
        %s209 = ssub.s32 %s17, 1
        %s210 = sand.u32 %s30, 1
        %s211 = scalar_lea.sflag [#allocation6], %s210
        %s212 = sand.u32 %s30, 1
        %s213 = smul.addr %s212, 12
        %s214 = scalar_lea.vmem [#allocation5], %s213
        // Predicated region
        $region41: #{tpu_custom_call.1} parent=39 // pred_check
          %p215 = pneg %p43
        $region42: #{tpu_custom_call.1} parent=39 // pred_check_branch
          %217 = sbr.rel (%p215) target = $region44
        $region43: #{tpu_custom_call.1} parent=39 // pred_region
          %218 = dma.done %s211, 192
        $region44: #{tpu_custom_call.1} parent=39 // pred_fallthru
          _
        %s219 = sand.u32 %s30, 1
        %s220 = scalar_lea.sflag [#allocation6], %s219
        %s221 = sand.u32 %s30, 1
        %s222 = smul.addr %s221, 12
        %s223 = scalar_lea.vmem [#allocation5], %s222
        %p224 = pneg %p43
        %p225 = pneg %p40
        %p226 = pneg %p64
        %p227 = pneg %p61
        %p228 = pneg %p85
        %p229 = pneg %p82
        %p230 = pneg %p106
        %p231 = pneg %p103
        %p232 = pneg %p127
        %p233 = pneg %p124
        %p234 = pneg %p153
        %p235 = pneg %p150
        %s236 = sand.u32 %s140, 1
        %s237 = scalar_lea.sflag [#allocation7], %s236
        %s238 = sand.u32 %s140, 1
        %s239 = smul.addr %s238, 16
        %s240 = scalar_lea.vmem [#allocation8], %s239
        %v244 = vlaneseq
        %v245 = vand.u32 %v244, 127
        %v246 = vadd.s32 %v245, 128
        %vm247 = vcmp.lt.s32.totalorder %v245, 0
        %v248 = vsub.s32 0, %v245
        %v249 = vsel %vm247, %v248, %v245
        %v250 = vshrl.u32 %v249, 4
        %v251 = vand.u32 %v249, 15
        %v252 = vsub.s32 0, %v251
        %v253 = vsel %vm247, %v252, %v251
        %vm254 = vcmp.lt.s32.totalorder %v246, 0
        %v255 = vsub.s32 0, %v246
        %v256 = vsel %vm254, %v255, %v246
        %v257 = vshrl.u32 %v256, 4
        %v258 = vand.u32 %v256, 15
        %v259 = vsub.s32 0, %v258
        %v260 = vsel %vm254, %v259, %v258
        %vm261 = vcmp.ne.s32.totalorder %v253, 0
        %vm262 = vcmp.ne.s32.totalorder %v260, 0
        %vm263 = vcmp.lt.s32.totalorder %v253, 0
        %vm264 = vcmp.lt.s32.totalorder %v260, 0
        %vm265 = vmand %vm263, %vm261
        %vm266 = vmand %vm264, %vm262
        %v267 = vadd.s32 %v253, 16
        %v268 = vadd.s32 %v260, 16
        %v269 = vsel %vm265, %v267, %v253
        %v270 = vsel %vm266, %v268, %v260
        %vm271 = vcmp.ne.s32.totalorder %v269, 0
        %vm272 = vcmp.ne.s32.totalorder %v270, 0
        %vm273 = vcmp.ne.s32.totalorder %v269, 15
        %vm274 = vcmp.ne.s32.totalorder %v270, 15
        %v275 = vld [vmem:[%s214] sm:$0xff]
        %v276 = vsel %vm271, 1, 0
        %v277 = vsel %vm272, 1, 0
        %vm278 = vcmp.eq.s32.totalorder %v276, 1
        %vm279 = vcmp.eq.s32.totalorder %v277, 1
        %vm280 = vmpackc.low %vm279, %vm278
        %v281 = vsel %vm280, %v275, 0
        %282 = vst [vmem:[#allocation2] sm:$0xff] %v281
        %v283 = vld [vmem:[%s214] sm:$0xff]
        %v284 = vld [vmem:[%s214 + $0x8] sm:$0xf]
        %287 = vrot.lane.b32.xlu0 %v283, 127
        %v288 = vpop.permute.xlu0 %287
        %289 = vrot.lane.b32.xlu0 %v284, 127
        %v290 = vpop.permute.xlu0 %289
        %v291 = vrot.slane %v288, 4
        %v292 = vrot.slane %v290, 4
        %vm293 = vcmask 1043456
        %v294 = vsel %vm293, %v291, %v292
        %vm295 = vcmask 1039360
        %v296 = vsel %vm295, %v288, %v294
        %298 = vst [vmem:[#allocation2 + $0x8] sm:$0xff] %v296
        %v299 = vld [vmem:[%s214] sm:$0xff]
        %v300 = vld [vmem:[%s214 + $0x8] sm:$0xf]
        %v301 = vsel %vm273, 1, 0
        %v302 = vsel %vm274, 1, 0
        %vm303 = vcmp.eq.s32.totalorder %v301, 1
        %vm304 = vcmp.eq.s32.totalorder %v302, 1
        %vm305 = vmpackc.low %vm304, %vm303
        %v306 = vsel %vm305, 65537, 0
        %307 = vrot.lane.b32.xlu0 %v306, 2
        %v308 = vpop.permute.xlu0 %307
        %v309 = vrot.slane %v308, 4
        %vm310 = vcmask 15360
        %v311 = vsel %vm310, %v309, %v308
        %vm312 = vcmp.ne.s16.totalorder %v311, 0
        %vm313 = vcmp.ne.s16.totalorder %v309, 0
        %v314 = vsel %vm312, %v299, 0
        %v315 = vsel %vm313, %v300, 0
        %318 = vrot.lane.b32.xlu0 %v314, 126
        %v319 = vpop.permute.xlu0 %318
        %320 = vrot.lane.b32.xlu0 %v315, 126
        %v321 = vpop.permute.xlu0 %320
        %v322 = vrot.slane %v319, 4
        %v323 = vrot.slane %v321, 4
        %v324 = vsel %vm293, %v322, %v323
        %vm325 = vcmask 1031168
        %v326 = vsel %vm325, %v319, %v324
        %328 = vst [vmem:[#allocation2 + $0x10] sm:$0xff] %v326
        %v329 = vld [vmem:[%s214] sm:$0xff]
        %v330 = vld [vmem:[%s214 + $0x8] sm:$0xf]
        %v331 = vsel %vm280, 65537, 0
        %332 = vrot.lane.b32.xlu0 %v331, 16
        %v333 = vpop.permute.xlu0 %332
        %v334 = vrot.slane %v333, 4
        %vm335 = vcmask 130048
        %v336 = vsel %vm335, %v334, %v333
        %vm337 = vcmp.ne.s16.totalorder %v336, 0
        %vm338 = vcmp.ne.s16.totalorder %v334, 0
        %v339 = vsel %vm337, %v329, 0
        %v340 = vsel %vm338, %v330, 0
        %343 = vrot.lane.b32.xlu0 %v339, 112
        %v344 = vpop.permute.xlu0 %343
        %345 = vrot.lane.b32.xlu0 %v340, 112
        %v346 = vpop.permute.xlu0 %345
        %v347 = vrot.slane %v344, 4
        %v348 = vrot.slane %v346, 4
        %v349 = vsel %vm293, %v347, %v348
        %vm350 = vcmask 916480
        %v351 = vsel %vm350, %v344, %v349
        %353 = vst [vmem:[#allocation2 + $0x18] sm:$0xff] %v351
        %v354 = vld [vmem:[%s214] sm:$0xff]
        %v355 = vld [vmem:[%s214 + $0x8] sm:$0xf]
        %358 = vrot.lane.b32.xlu0 %v354, 111
        %v359 = vpop.permute.xlu0 %358
        %360 = vrot.lane.b32.xlu0 %v355, 111
        %v361 = vpop.permute.xlu0 %360
        %v362 = vrot.slane %v359, 4
        %v363 = vrot.slane %v361, 4
        %v364 = vsel %vm293, %v362, %v363
        %vm365 = vcmask 908288
        %v366 = vsel %vm365, %v359, %v364
        %368 = vst [vmem:[#allocation2 + $0x20] sm:$0xff] %v366
        %v369 = vld [vmem:[%s214] sm:$0xff]
        %v370 = vld [vmem:[%s214 + $0x8] sm:$0xf]
        %371 = vrot.lane.b32.xlu0 %v306, 18
        %v372 = vpop.permute.xlu0 %371
        %v373 = vrot.slane %v372, 4
        %vm374 = vcmask 146432
        %v375 = vsel %vm374, %v373, %v372
        %vm376 = vcmp.ne.s16.totalorder %v375, 0
        %vm377 = vcmp.ne.s16.totalorder %v373, 0
        %v378 = vsel %vm376, %v369, 0
        %v379 = vsel %vm377, %v370, 0
        %382 = vrot.lane.b32.xlu0 %v378, 110
        %v383 = vpop.permute.xlu0 %382
        %384 = vrot.lane.b32.xlu0 %v379, 110
        %v385 = vpop.permute.xlu0 %384
        %v386 = vrot.slane %v383, 4
        %v387 = vrot.slane %v385, 4
        %v388 = vsel %vm293, %v386, %v387
        %vm389 = vcmask 900096
        %v390 = vsel %vm389, %v383, %v388
        %392 = vst [vmem:[#allocation2 + $0x28] sm:$0xff] %v390
        %v393 = vld [vmem:[%s214] sm:$0xff]
        %v394 = vld [vmem:[%s214 + $0x8] sm:$0xf]
        %395 = vrot.lane.b32.xlu0 %v331, 32
        %v396 = vpop.permute.xlu0 %395
        %v397 = vrot.slane %v396, 4
        %vm398 = vcmask 261120
        %v399 = vsel %vm398, %v397, %v396
        %vm400 = vcmp.ne.s16.totalorder %v399, 0
        %vm401 = vcmp.ne.s16.totalorder %v397, 0
        %v402 = vsel %vm400, %v393, 0
        %v403 = vsel %vm401, %v394, 0
        %406 = vrot.lane.b32.xlu0 %v402, 96
        %v407 = vpop.permute.xlu0 %406
        %408 = vrot.lane.b32.xlu0 %v403, 96
        %v409 = vpop.permute.xlu0 %408
        %v410 = vrot.slane %v407, 4
        %v411 = vrot.slane %v409, 4
        %v412 = vsel %vm293, %v410, %v411
        %vm413 = vcmask 785408
        %v414 = vsel %vm413, %v407, %v412
        %416 = vst [vmem:[#allocation2 + $0x30] sm:$0xff] %v414
        %v417 = vld [vmem:[%s214] sm:$0xff]
        %v418 = vld [vmem:[%s214 + $0x8] sm:$0xf]
        %421 = vrot.lane.b32.xlu0 %v417, 95
        %v422 = vpop.permute.xlu0 %421
        %423 = vrot.lane.b32.xlu0 %v418, 95
        %v424 = vpop.permute.xlu0 %423
        %v425 = vrot.slane %v422, 4
        %v426 = vrot.slane %v424, 4
        %v427 = vsel %vm293, %v425, %v426
        %vm428 = vcmask 777216
        %v429 = vsel %vm428, %v422, %v427
        %431 = vst [vmem:[#allocation2 + $0x38] sm:$0xff] %v429
        %v432 = vld [vmem:[%s214] sm:$0xff]
        %v433 = vld [vmem:[%s214 + $0x8] sm:$0xf]
        %434 = vrot.lane.b32.xlu0 %v306, 34
        %v435 = vpop.permute.xlu0 %434
        %v436 = vrot.slane %v435, 4
        %vm437 = vcmask 277504
        %v438 = vsel %vm437, %v436, %v435
        %vm439 = vcmp.ne.s16.totalorder %v438, 0
        %vm440 = vcmp.ne.s16.totalorder %v436, 0
        %v441 = vsel %vm439, %v432, 0
        %v442 = vsel %vm440, %v433, 0
        %445 = vrot.lane.b32.xlu0 %v441, 94
        %v446 = vpop.permute.xlu0 %445
        %447 = vrot.lane.b32.xlu0 %v442, 94
        %v448 = vpop.permute.xlu0 %447
        %v449 = vrot.slane %v446, 4
        %v450 = vrot.slane %v448, 4
        %v451 = vsel %vm293, %v449, %v450
        %vm452 = vcmask 769024
        %v453 = vsel %vm452, %v446, %v451
        %455 = vst [vmem:[#allocation2 + $0x40] sm:$0xff] %v453
        %v456 = vld [vmem:[%s1] sm:$0xf]
        %v457 = vld [vmem:[#allocation2] sm:$0xff]
        %v458 = vld [vmem:[#allocation2 + $0x8] sm:$0xff]
        %v459 = vld [vmem:[#allocation2 + $0x10] sm:$0xff]
        %v460 = vld [vmem:[#allocation2 + $0x18] sm:$0xff]
        %v461 = vld [vmem:[#allocation2 + $0x20] sm:$0xff]
        %v462 = vld [vmem:[#allocation2 + $0x28] sm:$0xff]
        %v463 = vld [vmem:[#allocation2 + $0x30] sm:$0xff]
        %v464 = vld [vmem:[#allocation2 + $0x38] sm:$0xff]
        %v465 = vld [vmem:[#allocation2 + $0x40] sm:$0xff]
        %v466 = vld [vmem:[%s2] sm:$0xff]
        %468 = vset.pattern.permute.xlu0 0
        %469 = vperm.xlu0 %468, %v466
        %v470 = vpop.permute.xlu0 %469
        %v481 = vunpack.c.l.b16 %v457
        %v482 = vunpack.c.h.b16 %v457
        %v483 = vunpack.c.l.b16 %v458
        %v484 = vunpack.c.h.b16 %v458
        %v485 = vunpack.c.l.b16 %v459
        %v486 = vunpack.c.h.b16 %v459
        %v487 = vunpack.c.l.b16 %v460
        %v488 = vunpack.c.h.b16 %v460
        %v489 = vunpack.c.l.b16 %v461
        %v490 = vunpack.c.h.b16 %v461
        %v491 = vunpack.c.l.b16 %v462
        %v492 = vunpack.c.h.b16 %v462
        %v493 = vunpack.c.l.b16 %v463
        %v494 = vunpack.c.h.b16 %v463
        %v495 = vunpack.c.l.b16 %v464
        %v496 = vunpack.c.h.b16 %v464
        %v497 = vunpack.c.l.b16 %v465
        %v498 = vunpack.c.h.b16 %v465
        %v499 = vpack.c.b16 %v483, %v481
        %v500 = vpack.c.b16 %v484, %v482
        %v501 = vpack.c.b16 %v487, %v485
        %v502 = vpack.c.b16 %v488, %v486
        %v503 = vpack.c.b16 %v491, %v489
        %v504 = vpack.c.b16 %v492, %v490
        %v505 = vpack.c.b16 %v495, %v493
        %v506 = vpack.c.b16 %v496, %v494
        %v507 = vpack.c.b16 %v497, %v497
        %v508 = vpack.c.b16 %v498, %v498
        %vm517 = vcmask 588800
        %v519 = vsel %vm517, %v456, 0
        %vm521 = vcmask 1043456
        %v523 = vsel %vm521, %v507, 0
        %v526 = vsel %vm521, %v508, 0
        %528 = vmatprep.subr.bf16.mxu0 %v500
        %529 = vmatpush1.bf16.msra.mxu0 %v499
        %530 = vmatprep.subr.bf16.mxu0 %v502
        %531 = vmatpush1.bf16.msra.mxu0 %v501
        %532 = vmatprep.subr.bf16.mxu0 %v504
        %533 = vmatpush1.bf16.msra.mxu0 %v503
        %534 = vmatprep.subr.bf16.mxu0 %v506
        %535 = vmatpush1.bf16.msra.mxu0 %v505
        %536 = vmatprep.subr.bf16.mxu0 %v526
        %537 = vmatpush1.bf16.msra.mxu0 %v523
        %538 = vmatprep.subr.bf16.mxu0 0
        %539 = vmatpush1.bf16.msra.mxu0 0
        %540 = vmatprep.subr.bf16.mxu0 0
        %541 = vmatpush1.bf16.msra.mxu0 0
        %542 = vmatprep.subr.bf16.mxu0 0
        %543 = vmatpush1.bf16.msra.mxu0 0
        %544 = vmatprep.subr.bf16.mxu0 0
        %545 = vmatpush1.bf16.msra.mxu0 0
        %546 = vmatprep.subr.bf16.mxu0 0
        %547 = vmatpush1.bf16.msra.mxu0 0
        %548 = vmatprep.subr.bf16.mxu0 0
        %549 = vmatpush1.bf16.msra.mxu0 0
        %550 = vmatprep.subr.bf16.mxu0 0
        %551 = vmatpush1.bf16.msra.mxu0 0
        %552 = vmatprep.subr.bf16.mxu0 0
        %553 = vmatpush1.bf16.msra.mxu0 0
        %554 = vmatprep.subr.bf16.mxu0 0
        %555 = vmatpush1.bf16.msra.mxu0 0
        %556 = vmatprep.subr.bf16.mxu0 0
        %557 = vmatpush1.bf16.msra.mxu0 0
        %558 = vmatprep.subr.bf16.mxu0 0
        %559 = vmatpush1.bf16.msra.mxu0 0
        %560 = vmatprep.mubr.bf16.mxu0 0
        %561 = vmatmul.mubr.bf16.gmra.mrb[0].mxu0 %v519
        %v562 = vpop.f32.mrb[0].mxu0
        %v563 = vadd.f32 %v470, %v562
        %v564 = vpop.f32.mrb[0].mxu0
        %v565 = vadd.f32 %v470, %v564
        %v566 = vpop.f32.mrb[0].mxu0
        %v567 = vpop.f32.mrb[0].mxu0
        %568 = vdwg.mxu0
        %v569 = vmax.f32 %v563, 0.0
        %v570 = vmax.f32 %v565, 0.0
        %v571 = vpack.c.bf16 %v569, %v569
        %v572 = vpack.c.bf16 %v570, %v570
        %573 = vst [vmem:[#allocation3] sm:$0xf] 0
        %vm574 = vcmask 134144
        %575 = vst.msk [vmem:[#allocation3 + $0xc] sm:$0xf] %vm574, 0
        %v578 = vunpack.c.l.b16 %v571
        %v579 = vunpack.c.l.b16 %v572
        %v580 = vpack.c.b16 %v579, %v578
        %582 = vst [vmem:[#allocation3 + $0x4] sm:$0xff] %v580
        %v583 = vld [vmem:[#allocation3] sm:$0xff]
        %v584 = vld [vmem:[#allocation3 + $0x8] sm:$0xf]
        %585 = vrot.lane.b32.xlu0 %v331, 111
        %v586 = vpop.permute.xlu0 %585
        %v587 = vrot.slane %v586, 4
        %v588 = vsel %vm365, %v587, %v586
        %vm589 = vcmp.ne.s16.totalorder %v588, 0
        %vm590 = vcmp.ne.s16.totalorder %v587, 0
        %v591 = vsel %vm589, %v583, 0
        %v592 = vsel %vm590, %v584, 0
        %595 = vrot.lane.b32.xlu0 %v591, 17
        %v596 = vpop.permute.xlu0 %595
        %597 = vrot.lane.b32.xlu0 %v592, 17
        %v598 = vpop.permute.xlu0 %597
        %v599 = vrot.slane %v596, 4
        %v600 = vrot.slane %v598, 4
        %v601 = vsel %vm293, %v599, %v600
        %vm602 = vcmask 138240
        %v603 = vsel %vm602, %v596, %v601
        %605 = vst [vmem:[#allocation4] sm:$0xff] %v603
        %v606 = vld [vmem:[#allocation3] sm:$0xff]
        %v607 = vld [vmem:[#allocation3 + $0x8] sm:$0xf]
        %610 = vrot.lane.b32.xlu0 %v606, 16
        %v611 = vpop.permute.xlu0 %610
        %612 = vrot.lane.b32.xlu0 %v607, 16
        %v613 = vpop.permute.xlu0 %612
        %v614 = vrot.slane %v611, 4
        %v615 = vrot.slane %v613, 4
        %v616 = vsel %vm293, %v614, %v615
        %v617 = vsel %vm335, %v611, %v616
        %619 = vst [vmem:[#allocation4 + $0x8] sm:$0xff] %v617
        %v620 = vld [vmem:[#allocation3] sm:$0xff]
        %v621 = vld [vmem:[#allocation3 + $0x8] sm:$0xf]
        %622 = vrot.lane.b32.xlu0 %v306, 113
        %v623 = vpop.permute.xlu0 %622
        %v624 = vrot.slane %v623, 4
        %vm625 = vcmask 924672
        %v626 = vsel %vm625, %v624, %v623
        %vm627 = vcmp.ne.s16.totalorder %v626, 0
        %vm628 = vcmp.ne.s16.totalorder %v624, 0
        %v629 = vsel %vm627, %v620, 0
        %v630 = vsel %vm628, %v621, 0
        %633 = vrot.lane.b32.xlu0 %v629, 15
        %v634 = vpop.permute.xlu0 %633
        %635 = vrot.lane.b32.xlu0 %v630, 15
        %v636 = vpop.permute.xlu0 %635
        %v637 = vrot.slane %v634, 4
        %v638 = vrot.slane %v636, 4
        %v639 = vsel %vm293, %v637, %v638
        %vm640 = vcmask 121856
        %v641 = vsel %vm640, %v634, %v639
        %643 = vst [vmem:[#allocation4 + $0x10] sm:$0xff] %v641
        %v644 = vld [vmem:[#allocation3] sm:$0xff]
        %v645 = vld [vmem:[#allocation3 + $0x8] sm:$0xf]
        %646 = vrot.lane.b32.xlu0 %v331, 127
        %v647 = vpop.permute.xlu0 %646
        %v648 = vrot.slane %v647, 4
        %v649 = vsel %vm295, %v648, %v647
        %vm650 = vcmp.ne.s16.totalorder %v649, 0
        %vm651 = vcmp.ne.s16.totalorder %v648, 0
        %v652 = vsel %vm650, %v644, 0
        %v653 = vsel %vm651, %v645, 0
        %656 = vrot.lane.b32.xlu0 %v652, 1
        %v657 = vpop.permute.xlu0 %656
        %658 = vrot.lane.b32.xlu0 %v653, 1
        %v659 = vpop.permute.xlu0 %658
        %v660 = vrot.slane %v657, 4
        %v661 = vrot.slane %v659, 4
        %v662 = vsel %vm293, %v660, %v661
        %vm663 = vcmask 7168
        %v664 = vsel %vm663, %v657, %v662
        %666 = vst [vmem:[#allocation4 + $0x18] sm:$0xff] %v664
        %v667 = vld [vmem:[#allocation3 + $0x4] sm:$0xff]
        %668 = vst [vmem:[#allocation4 + $0x20] sm:$0xff] %v667
        %v669 = vld [vmem:[#allocation3 + $0x4] sm:$0xff]
        %v670 = vld [vmem:[#allocation3 + $0xc] sm:$0xf]
        %671 = vrot.lane.b32.xlu0 %v306, 1
        %v672 = vpop.permute.xlu0 %671
        %v673 = vrot.slane %v672, 4
        %v674 = vsel %vm663, %v673, %v672
        %vm675 = vcmp.ne.s16.totalorder %v674, 0
        %vm676 = vcmp.ne.s16.totalorder %v673, 0
        %v677 = vsel %vm675, %v669, 0
        %v678 = vsel %vm676, %v670, 0
        %681 = vrot.lane.b32.xlu0 %v677, 127
        %v682 = vpop.permute.xlu0 %681
        %683 = vrot.lane.b32.xlu0 %v678, 127
        %v684 = vpop.permute.xlu0 %683
        %v685 = vrot.slane %v682, 4
        %v686 = vrot.slane %v684, 4
        %v687 = vsel %vm293, %v685, %v686
        %v688 = vsel %vm295, %v682, %v687
        %690 = vst [vmem:[#allocation4 + $0x28] sm:$0xff] %v688
        %v691 = vld [vmem:[#allocation3 + $0x4] sm:$0xff]
        %v692 = vld [vmem:[#allocation3 + $0xc] sm:$0xf]
        %693 = vrot.lane.b32.xlu0 %v331, 15
        %v694 = vpop.permute.xlu0 %693
        %v695 = vrot.slane %v694, 4
        %v696 = vsel %vm640, %v695, %v694
        %vm697 = vcmp.ne.s16.totalorder %v696, 0
        %vm698 = vcmp.ne.s16.totalorder %v695, 0
        %v699 = vsel %vm697, %v691, 0
        %v700 = vsel %vm698, %v692, 0
        %703 = vrot.lane.b32.xlu0 %v699, 113
        %v704 = vpop.permute.xlu0 %703
        %705 = vrot.lane.b32.xlu0 %v700, 113
        %v706 = vpop.permute.xlu0 %705
        %v707 = vrot.slane %v704, 4
        %v708 = vrot.slane %v706, 4
        %v709 = vsel %vm293, %v707, %v708
        %v710 = vsel %vm625, %v704, %v709
        %712 = vst [vmem:[#allocation4 + $0x30] sm:$0xff] %v710
        %v713 = vld [vmem:[#allocation3 + $0x4] sm:$0xff]
        %v714 = vld [vmem:[#allocation3 + $0xc] sm:$0xf]
        %717 = vrot.lane.b32.xlu0 %v713, 112
        %v718 = vpop.permute.xlu0 %717
        %719 = vrot.lane.b32.xlu0 %v714, 112
        %v720 = vpop.permute.xlu0 %719
        %v721 = vrot.slane %v718, 4
        %v722 = vrot.slane %v720, 4
        %v723 = vsel %vm293, %v721, %v722
        %v724 = vsel %vm350, %v718, %v723
        %726 = vst [vmem:[#allocation4 + $0x38] sm:$0xff] %v724
        %v727 = vld [vmem:[#allocation3 + $0x4] sm:$0xff]
        %v728 = vld [vmem:[#allocation3 + $0xc] sm:$0xf]
        %729 = vrot.lane.b32.xlu0 %v306, 17
        %v730 = vpop.permute.xlu0 %729
        %v731 = vrot.slane %v730, 4
        %v732 = vsel %vm602, %v731, %v730
        %vm733 = vcmp.ne.s16.totalorder %v732, 0
        %vm734 = vcmp.ne.s16.totalorder %v731, 0
        %v735 = vsel %vm733, %v727, 0
        %v736 = vsel %vm734, %v728, 0
        %739 = vrot.lane.b32.xlu0 %v735, 111
        %v740 = vpop.permute.xlu0 %739
        %741 = vrot.lane.b32.xlu0 %v736, 111
        %v742 = vpop.permute.xlu0 %741
        %v743 = vrot.slane %v740, 4
        %v744 = vrot.slane %v742, 4
        %v745 = vsel %vm293, %v743, %v744
        %v746 = vsel %vm365, %v740, %v745
        %748 = vst [vmem:[#allocation4 + $0x40] sm:$0xff] %v746
        %v749 = vld [vmem:[%s3] sm:$0xf]
        %v750 = vld [vmem:[#allocation4] sm:$0xff]
        %v751 = vld [vmem:[#allocation4 + $0x8] sm:$0xff]
        %v752 = vld [vmem:[#allocation4 + $0x10] sm:$0xff]
        %v753 = vld [vmem:[#allocation4 + $0x18] sm:$0xff]
        %v754 = vld [vmem:[#allocation4 + $0x20] sm:$0xff]
        %v755 = vld [vmem:[#allocation4 + $0x28] sm:$0xff]
        %v756 = vld [vmem:[#allocation4 + $0x30] sm:$0xff]
        %v757 = vld [vmem:[#allocation4 + $0x38] sm:$0xff]
        %v758 = vld [vmem:[#allocation4 + $0x40] sm:$0xff]
        %v759 = vld [vmem:[%s4] sm:$0xff]
        %761 = vset.pattern.permute.xlu0 0
        %762 = vperm.xlu0 %761, %v759
        %v763 = vpop.permute.xlu0 %762
        %v774 = vunpack.c.l.b16 %v750
        %v775 = vunpack.c.h.b16 %v750
        %v776 = vunpack.c.l.b16 %v751
        %v777 = vunpack.c.h.b16 %v751
        %v778 = vunpack.c.l.b16 %v752
        %v779 = vunpack.c.h.b16 %v752
        %v780 = vunpack.c.l.b16 %v753
        %v781 = vunpack.c.h.b16 %v753
        %v782 = vunpack.c.l.b16 %v754
        %v783 = vunpack.c.h.b16 %v754
        %v784 = vunpack.c.l.b16 %v755
        %v785 = vunpack.c.h.b16 %v755
        %v786 = vunpack.c.l.b16 %v756
        %v787 = vunpack.c.h.b16 %v756
        %v788 = vunpack.c.l.b16 %v757
        %v789 = vunpack.c.h.b16 %v757
        %v790 = vunpack.c.l.b16 %v758
        %v791 = vunpack.c.h.b16 %v758
        %v792 = vpack.c.b16 %v776, %v774
        %v793 = vpack.c.b16 %v777, %v775
        %v794 = vpack.c.b16 %v780, %v778
        %v795 = vpack.c.b16 %v781, %v779
        %v796 = vpack.c.b16 %v784, %v782
        %v797 = vpack.c.b16 %v785, %v783
        %v798 = vpack.c.b16 %v788, %v786
        %v799 = vpack.c.b16 %v789, %v787
        %v800 = vpack.c.b16 %v790, %v790
        %v801 = vpack.c.b16 %v791, %v791
        %v811 = vsel %vm517, %v749, 0
        %v814 = vsel %vm521, %v800, 0
        %v817 = vsel %vm521, %v801, 0
        %819 = vmatprep.subr.bf16.mxu0 %v793
        %820 = vmatpush1.bf16.msra.mxu0 %v792
        %821 = vmatprep.subr.bf16.mxu0 %v795
        %822 = vmatpush1.bf16.msra.mxu0 %v794
        %823 = vmatprep.subr.bf16.mxu0 %v797
        %824 = vmatpush1.bf16.msra.mxu0 %v796
        %825 = vmatprep.subr.bf16.mxu0 %v799
        %826 = vmatpush1.bf16.msra.mxu0 %v798
        %827 = vmatprep.subr.bf16.mxu0 %v817
        %828 = vmatpush1.bf16.msra.mxu0 %v814
        %829 = vmatprep.subr.bf16.mxu0 0
        %830 = vmatpush1.bf16.msra.mxu0 0
        %831 = vmatprep.subr.bf16.mxu0 0
        %832 = vmatpush1.bf16.msra.mxu0 0
        %833 = vmatprep.subr.bf16.mxu0 0
        %834 = vmatpush1.bf16.msra.mxu0 0
        %835 = vmatprep.subr.bf16.mxu0 0
        %836 = vmatpush1.bf16.msra.mxu0 0
        %837 = vmatprep.subr.bf16.mxu0 0
        %838 = vmatpush1.bf16.msra.mxu0 0
        %839 = vmatprep.subr.bf16.mxu0 0
        %840 = vmatpush1.bf16.msra.mxu0 0
        %841 = vmatprep.subr.bf16.mxu0 0
        %842 = vmatpush1.bf16.msra.mxu0 0
        %843 = vmatprep.subr.bf16.mxu0 0
        %844 = vmatpush1.bf16.msra.mxu0 0
        %845 = vmatprep.subr.bf16.mxu0 0
        %846 = vmatpush1.bf16.msra.mxu0 0
        %847 = vmatprep.subr.bf16.mxu0 0
        %848 = vmatpush1.bf16.msra.mxu0 0
        %849 = vmatprep.subr.bf16.mxu0 0
        %850 = vmatpush1.bf16.msra.mxu0 0
        %851 = vmatprep.mubr.bf16.mxu0 0
        %852 = vmatmul.mubr.bf16.gmra.mrb[0].mxu0 %v811
        %v853 = vpop.f32.mrb[0].mxu0
        %v854 = vadd.f32 %v763, %v853
        %v855 = vpop.f32.mrb[0].mxu0
        %v856 = vadd.f32 %v763, %v855
        %v857 = vpop.f32.mrb[0].mxu0
        %v858 = vpop.f32.mrb[0].mxu0
        %859 = vdwg.mxu0
        %v860 = vmax.f32 %v854, 0.0
        %v861 = vmax.f32 %v856, 0.0
        %862 = vst [vmem:[%s240] sm:$0xff] %v860
        %863 = vst [vmem:[%s240 + $0x8] sm:$0xff] %v861
        %s864 = sand.u32 %s140, 1
        %s865 = scalar_lea.sflag [#allocation7], %s864
        %s866 = sand.u32 %s140, 1
        %s867 = smul.addr %s866, 16
        %s868 = scalar_lea.vmem [#allocation8], %s867
        // Predicated region
        $region45: #{tpu_custom_call.1} parent=39 // pred_check
          %p869 = pneg %p150
        $region46: #{tpu_custom_call.1} parent=39 // pred_check_branch
          %871 = sbr.rel (%p869) target = $region48
        $region47: #{tpu_custom_call.1} parent=39 // pred_region
          %s873 = ssub.s32 256, 256
          %874 = vsyncadd %s865, %s873
          %s875 = smul.addr %s22, 2
          %s876 = smul.addr %s875, 128
          %s877 = scalar_lea.hbm %s5, %s876
          %s879 = sshll.u32 %s868, 4
          %s880 = int_to_ptr.vmem [resolvable:$true] %s879
          %882 = dma.vmem_to_hbm [thread:$0]  %s880, 256, %s877, %s865
        $region48: #{tpu_custom_call.1} parent=39 // pred_fallthru
          _
      $region40: #{tpu_custom_call.1} parent=5 // pred_fallthru
        _
      %p883 = scmp.le.s32.totalorder 2, %s17
      // Predicated region
      $region49: #{tpu_custom_call.1} parent=5 // pred_check
        %p884 = pneg %p883
      $region50: #{tpu_custom_call.1} parent=5 // pred_check_branch
        %886 = sbr.rel (%p884) target = $region52
      $region51: #{tpu_custom_call.1} parent=5 // pred_region
        %s887 = ssub.s32 %s17, 2
        // Predicated region
        $region53: #{tpu_custom_call.1} parent=51 // pred_check
          %p888 = pneg %p156
        $region54: #{tpu_custom_call.1} parent=51 // pred_check_branch
          %890 = sbr.rel (%p888) target = $region56
        $region55: #{tpu_custom_call.1} parent=51 // pred_region
          %s891 = sand.u32 %s141, 1
          %s892 = scalar_lea.sflag [#allocation7], %s891
          %s893 = sand.u32 %s141, 1
          %s894 = smul.addr %s893, 16
          %s895 = scalar_lea.vmem [#allocation8], %s894
          %896 = dma.done %s892, 256
        $region56: #{tpu_custom_call.1} parent=51 // pred_fallthru
          _
      $region52: #{tpu_custom_call.1} parent=5 // pred_fallthru
        _
    $region6: #{tpu_custom_call.1} parent=1 // loop_footer
      %s21 = sadd.s32 1, %s17
    $region7: #{tpu_custom_call.1} parent=1 // loop_footer_branch
      %16 = sbr.rel target = $region3
    $region8: #{tpu_custom_call.1} parent=1 // loop_exit
      _
    %897 = vsyncpa [#allocation6], 1
    %s898 = scalar_lea.sflag [#allocation6], 1
    %899 = vsyncpa %s898, 1
    %900 = vsyncpa [#allocation7], 1
    %s901 = scalar_lea.sflag [#allocation7], 1
    %902 = vsyncpa %s901, 1

</llo_original>
